<compile_context>
chip_gen: v5e
topology: v5e:2x2
jax: 0.10.0
libtpu: 0.0.40
codegen_flags: <defaults>
</compile_context>

<pallas_src>
import jax
import jax.numpy as jnp
from jax.experimental import pallas as pl
from jax.experimental.pallas import tpu as pltpu

HIDDEN = 256


def _round_up(x, m):
    return ((x + m - 1) // m) * m


def sac_critic_kernel(xa_ref, w1_ref, b1_ref, w2_ref, b2_ref, w3_ref, b3_ref,
                      o_ref):
    # Layer 1: single fused matmul over the zero-padded [x | a] tile (K = 128).
    h1 = jnp.dot(xa_ref[...], w1_ref[...],
                 preferred_element_type=jnp.float32) + b1_ref[...]
    h1 = jnp.maximum(h1, 0.0)

    # Layer 2: MXU matmul, bf16 operands, f32 accumulation.
    h2 = jnp.dot(h1.astype(w2_ref.dtype), w2_ref[...],
                 preferred_element_type=jnp.float32) + b2_ref[...]
    h2 = jnp.maximum(h2, 0.0)

    # Layer 3 has N=1: keep it off the MXU.  VPU multiply by the W3 row, then
    # an XLU lane reduction; b3 is a scalar read from SMEM.
    q = jnp.sum(h2 * w3_ref[...], axis=-1, keepdims=True) + b3_ref[0]
    o_ref[...] = q.astype(o_ref.dtype)


def _preferred_tile_b():
    try:
        kind = jax.devices()[0].device_kind.lower()
    except Exception:
        return 128
    # v5e: 4x128x128 MXU -> 128-row tiles saturate it.  v6e/v7x: 256 rows.
    return 128 if "v5" in kind else 256


def sac_critic_forward(x, a, params, *, tile_b=None,
                       compute_dtype=jnp.bfloat16):
    """x: (B, obs_dim), a: (B, act_dim) -> (B, 1) float32."""
    w1, b1, w2, b2, w3, b3 = params
    B = x.shape[0]
    k_pad, hidden = w1.shape

    preferred = tile_b if tile_b is not None else _preferred_tile_b()
    if B < preferred:
        # Single grid step; block == full padded array so any 8-row multiple
        # is layout-legal.  Avoids padding a batch of 8 up to 128 rows.
        tile_b = _round_up(max(B, 1), 8)
        b_pad = tile_b
    else:
        tile_b = preferred
        b_pad = _round_up(B, tile_b)

    # Fuse the concat and zero-pad K up to the lane-friendly width W1 was
    # built for; pad the batch to a whole number of tiles (padded rows are
    # sliced away below).
    xa = jnp.concatenate([x, a], axis=1).astype(compute_dtype)
    xa = jnp.pad(xa, ((0, b_pad - B), (0, k_pad - xa.shape[1])))

    grid = (b_pad // tile_b,)
    out = pl.pallas_call(
        sac_critic_kernel,
        out_shape=jax.ShapeDtypeStruct((b_pad, 1), jnp.float32),
        grid_spec=pltpu.PrefetchScalarGridSpec(
            num_scalar_prefetch=0,
            grid=grid,
            in_specs=[
                # Streaming batch tile (double-buffered by Pallas).
                pl.BlockSpec((tile_b, k_pad), lambda i: (i, 0)),
                # Weights / biases: constant block index -> VMEM-resident.
                pl.BlockSpec((k_pad, hidden), lambda i: (0, 0)),   # W1 (padded)
                pl.BlockSpec((1, hidden), lambda i: (0, 0)),       # b1
                pl.BlockSpec((hidden, hidden), lambda i: (0, 0)),  # W2
                pl.BlockSpec((1, hidden), lambda i: (0, 0)),       # b2
                pl.BlockSpec((1, hidden), lambda i: (0, 0)),       # W3 row
                # Scalar output bias lives in SMEM (no padded VMEM tile/DMA).
                pl.BlockSpec(memory_space=pltpu.MemorySpace.SMEM),  # b3
            ],
            out_specs=pl.BlockSpec((tile_b, 1), lambda i: (i, 0)),
        ),
        compiler_params=pltpu.CompilerParams(
            dimension_semantics=("parallel",),
        ),
    )(xa, w1, b1, w2, b2, w3, b3)
    return out[:B]


def init_params(key, obs_dim, act_dim, hidden=HIDDEN,
                compute_dtype=jnp.bfloat16):
    """PyTorch-style nn.Linear init.  Weights stored as (in, out) so the kernel
    computes y = x @ W + b, identical to torch's y = x @ W_pt.T + b."""
    k = jax.random.split(key, 6)
    in1 = obs_dim + act_dim
    lim1 = 1.0 / jnp.sqrt(in1)
    lim2 = 1.0 / jnp.sqrt(hidden)

    w1 = jax.random.uniform(k[0], (in1, hidden), jnp.float32, -lim1, lim1)
    b1 = jax.random.uniform(k[1], (1, hidden), jnp.float32, -lim1, lim1)
    w2 = jax.random.uniform(k[2], (hidden, hidden), jnp.float32, -lim2, lim2)
    b2 = jax.random.uniform(k[3], (1, hidden), jnp.float32, -lim2, lim2)
    # Row form of Linear(256, 1).weight (shape (1, 256) in torch already).
    w3 = jax.random.uniform(k[4], (1, hidden), jnp.float32, -lim2, lim2)
    b3 = jax.random.uniform(k[5], (1,), jnp.float32, -lim2, lim2)

    # Zero-pad W1's input dim to a multiple of 128 so layer 1 is a single
    # lane-aligned MXU matmul over the padded [x | a] block (padded rows are
    # zero -> result unchanged; this fuses the concat into one dot).
    k_pad = _round_up(in1, 128)
    w1p = jnp.zeros((k_pad, hidden), jnp.float32).at[:in1, :].set(w1)

    # bf16 only for MXU operands; biases and the VPU-side W3 row stay f32.
    return (w1p.astype(compute_dtype), b1,
            w2.astype(compute_dtype), b2,
            w3, b3)


def reference_forward(x, a, params):
    """Plain-JAX f32 reference matching the PyTorch module semantics."""
    w1, b1, w2, b2, w3, b3 = params
    xa = jnp.concatenate([x, a], axis=1)
    w1 = w1[: xa.shape[1]].astype(jnp.float32)
    h = jnp.maximum(xa @ w1 + b1, 0.0)
    h = jnp.maximum(h @ w2.astype(jnp.float32) + b2, 0.0)
    return h @ w3.T + b3


if __name__ == "__main__":
    obs_dim, act_dim, batch = 16, 8, 8

    key = jax.random.PRNGKey(0)
    kx, ka, kp = jax.random.split(key, 3)
    x = jax.random.normal(kx, (batch, obs_dim), jnp.float32)
    a = jax.random.normal(ka, (batch, act_dim), jnp.float32)
    params = init_params(kp, obs_dim, act_dim)

    out = jax.block_until_ready(sac_critic_forward(x, a, params))

    ref = reference_forward(x, a, params)
    assert out.shape == (batch, 1), out.shape
    # bf16 MXU operands with f32 accumulation -> allow bf16-level error.
    assert jnp.allclose(out, ref, atol=2e-2, rtol=2e-2), (
        f"max abs err = {jnp.max(jnp.abs(out - ref)):.4e}")

    print("KERNEL_OK")
</pallas_src>

<mosaic_0001>
module attributes {stable_mosaic.version = 11 : i64} {
  func.func @sac_critic_kernel(%arg0: i32, %arg1: memref<8x128xbf16, #tpu.memory_space<vmem>>, %arg2: memref<128x256xbf16, #tpu.memory_space<vmem>>, %arg3: memref<1x256xf32, #tpu.memory_space<vmem>>, %arg4: memref<256x256xbf16, #tpu.memory_space<vmem>>, %arg5: memref<1x256xf32, #tpu.memory_space<vmem>>, %arg6: memref<1x256xf32, #tpu.memory_space<vmem>>, %arg7: memref<1xf32, #tpu.memory_space<smem>>, %arg8: memref<8x1xf32, #tpu.memory_space<vmem>>) attributes {dimension_semantics = [#tpu.dimension_semantics<parallel>], iteration_bounds = array<i64: 1>, scalar_prefetch = 0 : i64, scratch_operands = 0 : i64, tpu.core_type = #tpu.core_type<tc>, window_params = [{transform_indices = @transform_0, window_bounds = array<i64: 8, 128>}, {pipeline_mode = #tpu.pipeline_mode<synchronous>, transform_indices = @transform_1, window_bounds = array<i64: 128, 256>}, {pipeline_mode = #tpu.pipeline_mode<synchronous>, transform_indices = @transform_2, window_bounds = array<i64: 1, 256>}, {pipeline_mode = #tpu.pipeline_mode<synchronous>, transform_indices = @transform_3, window_bounds = array<i64: 256, 256>}, {pipeline_mode = #tpu.pipeline_mode<synchronous>, transform_indices = @transform_4, window_bounds = array<i64: 1, 256>}, {pipeline_mode = #tpu.pipeline_mode<synchronous>, transform_indices = @transform_5, window_bounds = array<i64: 1, 256>}, {transform_indices = @transform_6, window_bounds = array<i64: 1>}, {transform_indices = @transform_7, window_bounds = array<i64: 8, 1>}]} {
    %c0 = arith.constant 0 : index
    %c0_0 = arith.constant 0 : index
    %0 = vector.load %arg1[%c0, %c0_0] : memref<8x128xbf16, #tpu.memory_space<vmem>>, vector<8x128xbf16>
    %c0_1 = arith.constant 0 : index
    %c0_2 = arith.constant 0 : index
    %1 = vector.load %arg2[%c0_1, %c0_2] : memref<128x256xbf16, #tpu.memory_space<vmem>>, vector<128x256xbf16>
    %cst = arith.constant dense<0.000000e+00> : vector<8x256xf32>
    %2 = tpu.matmul %0, %1, %cst {dimension_numbers = #tpu.dot_dimension_numbers<[1], [0], [0], [1], [0, 0, 1, 1], [], []>} : vector<8x128xbf16>, vector<128x256xbf16>, vector<8x256xf32> -> vector<8x256xf32>
    %c0_3 = arith.constant 0 : index
    %c0_4 = arith.constant 0 : index
    %3 = vector.load %arg3[%c0_3, %c0_4] : memref<1x256xf32, #tpu.memory_space<vmem>>, vector<1x256xf32>
    %4 = vector.broadcast %3 : vector<1x256xf32> to vector<8x256xf32>
    %5 = arith.addf %2, %4 : vector<8x256xf32>
    %cst_5 = arith.constant 0.000000e+00 : f32
    %6 = vector.broadcast %cst_5 : f32 to vector<8x256xf32>
    %7 = arith.maximumf %5, %6 : vector<8x256xf32>
    %8 = arith.truncf %7 : vector<8x256xf32> to vector<8x256xbf16>
    %c0_6 = arith.constant 0 : index
    %c0_7 = arith.constant 0 : index
    %9 = vector.load %arg4[%c0_6, %c0_7] : memref<256x256xbf16, #tpu.memory_space<vmem>>, vector<256x256xbf16>
    %cst_8 = arith.constant dense<0.000000e+00> : vector<8x256xf32>
    %10 = tpu.matmul %8, %9, %cst_8 {dimension_numbers = #tpu.dot_dimension_numbers<[1], [0], [0], [1], [0, 0, 1, 1], [], []>} : vector<8x256xbf16>, vector<256x256xbf16>, vector<8x256xf32> -> vector<8x256xf32>
    %c0_9 = arith.constant 0 : index
    %c0_10 = arith.constant 0 : index
    %11 = vector.load %arg5[%c0_9, %c0_10] : memref<1x256xf32, #tpu.memory_space<vmem>>, vector<1x256xf32>
    %12 = vector.broadcast %11 : vector<1x256xf32> to vector<8x256xf32>
    %13 = arith.addf %10, %12 : vector<8x256xf32>
    %cst_11 = arith.constant 0.000000e+00 : f32
    %14 = vector.broadcast %cst_11 : f32 to vector<8x256xf32>
    %15 = arith.maximumf %13, %14 : vector<8x256xf32>
    %c0_12 = arith.constant 0 : index
    %c0_13 = arith.constant 0 : index
    %16 = vector.load %arg6[%c0_12, %c0_13] : memref<1x256xf32, #tpu.memory_space<vmem>>, vector<1x256xf32>
    %17 = vector.broadcast %16 : vector<1x256xf32> to vector<8x256xf32>
    %18 = arith.mulf %15, %17 : vector<8x256xf32>
    %cst_14 = arith.constant dense<0.000000e+00> : vector<8xf32>
    %19 = vector.multi_reduction <add>, %18, %cst_14 [1] : vector<8x256xf32> to vector<8xf32>
    %20 = vector.shape_cast %19 : vector<8xf32> to vector<8x1xf32>
    %c0_15 = arith.constant 0 : index
    %21 = memref.load %arg7[%c0_15] : memref<1xf32, #tpu.memory_space<smem>>
    %22 = vector.broadcast %21 : f32 to vector<8x1xf32>
    %23 = arith.addf %20, %22 : vector<8x1xf32>
    %c0_16 = arith.constant 0 : index
    %c0_17 = arith.constant 0 : index
    %24 = vector.load %arg8[%c0_16, %c0_17] : memref<8x1xf32, #tpu.memory_space<vmem>>, vector<8x1xf32>
    tpu.vector_store %arg8[%c0_16, %c0_17], %23 {strides = array<i32>} : memref<8x1xf32, #tpu.memory_space<vmem>>, vector<8x1xf32>,
    return
  }
  func.func @transform_0(%arg0: i32) -> (i32, i32) {
    %c0_i32 = arith.constant 0 : i32
    %c0_i32_0 = arith.constant 0 : i32
    return %arg0, %c0_i32 : i32, i32
  }
  func.func @transform_1(%arg0: i32) -> (i32, i32) {
    %c0_i32 = arith.constant 0 : i32
    %c0_i32_0 = arith.constant 0 : i32
    %c0_i32_1 = arith.constant 0 : i32
    return %c0_i32, %c0_i32_0 : i32, i32
  }
  func.func @transform_2(%arg0: i32) -> (i32, i32) {
    %c0_i32 = arith.constant 0 : i32
    %c0_i32_0 = arith.constant 0 : i32
    %c0_i32_1 = arith.constant 0 : i32
    return %c0_i32, %c0_i32_0 : i32, i32
  }
  func.func @transform_3(%arg0: i32) -> (i32, i32) {
    %c0_i32 = arith.constant 0 : i32
    %c0_i32_0 = arith.constant 0 : i32
    %c0_i32_1 = arith.constant 0 : i32
    return %c0_i32, %c0_i32_0 : i32, i32
  }
  func.func @transform_4(%arg0: i32) -> (i32, i32) {
    %c0_i32 = arith.constant 0 : i32
    %c0_i32_0 = arith.constant 0 : i32
    %c0_i32_1 = arith.constant 0 : i32
    return %c0_i32, %c0_i32_0 : i32, i32
  }
  func.func @transform_5(%arg0: i32) -> (i32, i32) {
    %c0_i32 = arith.constant 0 : i32
    %c0_i32_0 = arith.constant 0 : i32
    %c0_i32_1 = arith.constant 0 : i32
    return %c0_i32, %c0_i32_0 : i32, i32
  }
  func.func @transform_6(%arg0: i32) -> i32 {
    %c0_i32 = arith.constant 0 : i32
    %c0_i32_0 = arith.constant 0 : i32
    return %c0_i32 : i32
  }
  func.func @transform_7(%arg0: i32) -> (i32, i32) {
    %c0_i32 = arith.constant 0 : i32
    %c0_i32_0 = arith.constant 0 : i32
    return %arg0, %c0_i32 : i32, i32
  }
}

</mosaic_0001>

<llo_original>
// kernel: tpu_custom_call.1
$region0: #{tpu_custom_call.1}
  #allocation0 [shape = 'u32[]', space=smem, size = 0x4, offset = 0x4, fixed_abs, tag = 'smem constant byte address 0x4 - core index']
  #allocation1 [shape = 'u32[72,128]{1,0:T(1,128)}', space=vmem, size = 0x9000, scoped, tag = 'internal scratch']
  #allocation2 [shape = 'f32[1]{0:T(128)S(6)}', space=smem, size = 0x200, scoped, tag = 'scoped memory for tpu_custom_call.1']
  %s0 = inlined_call_operand.hbm [shape: bf16[8,128], index: 0, kind: input, shape index: {}]
  %s1 = inlined_call_operand.hbm [shape: bf16[128,256], index: 1, kind: input, shape index: {}]
  %s2 = inlined_call_operand.vmem [shape: f32[1,256], index: 2, kind: input, shape index: {}]
  %s3 = inlined_call_operand.hbm [shape: bf16[256,256], index: 3, kind: input, shape index: {}]
  %s4 = inlined_call_operand.vmem [shape: f32[1,256], index: 4, kind: input, shape index: {}]
  %s5 = inlined_call_operand.vmem [shape: f32[1,256], index: 5, kind: input, shape index: {}]
  %s6 = inlined_call_operand.<no memory space> [shape: f32[1], index: 6, kind: input, shape index: {}]
  %s7 = inlined_call_operand.vmem [shape: f32[8,1], index: 7, kind: output, shape index: {}]
  %s8 = sld [smem:[#allocation0]]
  $region50: #{tpu_custom_call.1} parent=0
    _
  %s10 = ssub.s32 1, %s8
  %s11 = scalar_select 0, %s10, %s8
  %12 = sst [smem:[#allocation2]] %s6
  $region1: #{tpu_custom_call.1} parent=0
    #allocation3 [shape = 'u8[2048]{0}', space=vmem, size = 0x800, scoped, tag = 'input window, operand 0, single buffered']
    #allocation4 [shape = 's32[1]{0}', space=sflag, size = 0x4, scoped, tag = 'scoped memory for tpu_custom_call.1']
    #allocation5 [shape = 'u8[65536]{0}', space=vmem, size = 0x10000, scoped, tag = 'input window, operand 1, single buffered']
    #allocation6 [shape = 's32[1]{0}', space=sflag, size = 0x4, scoped, tag = 'scoped memory for tpu_custom_call.1']
    #allocation7 [shape = 'u8[131072]{0}', space=vmem, size = 0x20000, scoped, tag = 'input window, operand 3, single buffered']
    %13 = vsyncpa [#allocation4], 0
    %14 = vsyncpa [#allocation6], 0
    // Predicated region
    $region2: #{tpu_custom_call.1} parent=1 // pred_check
      _
    $region3: #{tpu_custom_call.1} parent=1 // pred_check_branch
      %16 = sbr.rel (0) target = $region5
    $region4: #{tpu_custom_call.1} parent=1 // pred_region
      %18 = vsyncadd [#allocation4], 0
      %s20 = sshll.u32 %s0, 4
      %s21 = int_to_ptr.hbm [resolvable:$true] %s20
      %s22 = sshll.u32 [#allocation3], 4
      %s23 = int_to_ptr.vmem [resolvable:$true] %s22
      %25 = dma.hbm_to_vmem [thread:$0]  %s21, 64, %s23, [#allocation4]
    $region5: #{tpu_custom_call.1} parent=1 // pred_fallthru
      _
    // Predicated region
    $region6: #{tpu_custom_call.1} parent=1 // pred_check
      _
    $region7: #{tpu_custom_call.1} parent=1 // pred_check_branch
      %27 = sbr.rel (0) target = $region9
    $region8: #{tpu_custom_call.1} parent=1 // pred_region
      %29 = vsyncadd [#allocation6], 0
      %s30 = sshll.u32 %s1, 4
      %s31 = int_to_ptr.hbm [resolvable:$true] %s30
      %s32 = sshll.u32 [#allocation5], 4
      %s33 = int_to_ptr.vmem [resolvable:$true] %s32
      %38 = dma.hbm_to_vmem [thread:$0]  %s31, 2048, %s33, [#allocation6], 128, 128, 8
    $region9: #{tpu_custom_call.1} parent=1 // pred_fallthru
      _
    // Predicated region
    $region10: #{tpu_custom_call.1} parent=1 // pred_check
      _
    $region11: #{tpu_custom_call.1} parent=1 // pred_check_branch
      %40 = sbr.rel (0) target = $region13
    $region12: #{tpu_custom_call.1} parent=1 // pred_region
      _
    $region13: #{tpu_custom_call.1} parent=1 // pred_fallthru
      _
    // Predicated region
    $region14: #{tpu_custom_call.1} parent=1 // pred_check
      _
    $region15: #{tpu_custom_call.1} parent=1 // pred_check_branch
      %42 = sbr.rel (0) target = $region17
    $region16: #{tpu_custom_call.1} parent=1 // pred_region
      %44 = vsyncadd [#allocation6], 0
      %s45 = sshll.u32 %s3, 4
      %s46 = int_to_ptr.hbm [resolvable:$true] %s45
      %s47 = sshll.u32 [#allocation7], 4
      %s48 = int_to_ptr.vmem [resolvable:$true] %s47
      %53 = dma.hbm_to_vmem [thread:$0]  %s46, 4096, %s48, [#allocation6], 128, 128, 8
    $region17: #{tpu_custom_call.1} parent=1 // pred_fallthru
      _
    // Predicated region
    $region18: #{tpu_custom_call.1} parent=1 // pred_check
      _
    $region19: #{tpu_custom_call.1} parent=1 // pred_check_branch
      %55 = sbr.rel (0) target = $region21
    $region20: #{tpu_custom_call.1} parent=1 // pred_region
      _
    $region21: #{tpu_custom_call.1} parent=1 // pred_fallthru
      _
    // Predicated region
    $region22: #{tpu_custom_call.1} parent=1 // pred_check
      _
    $region23: #{tpu_custom_call.1} parent=1 // pred_check_branch
      %57 = sbr.rel (0) target = $region25
    $region24: #{tpu_custom_call.1} parent=1 // pred_region
      _
    $region25: #{tpu_custom_call.1} parent=1 // pred_fallthru
      _
    // Predicated region
    $region26: #{tpu_custom_call.1} parent=1 // pred_check
      _
    $region27: #{tpu_custom_call.1} parent=1 // pred_check_branch
      %59 = sbr.rel (0) target = $region29
    $region28: #{tpu_custom_call.1} parent=1 // pred_region
      _
    $region29: #{tpu_custom_call.1} parent=1 // pred_fallthru
      _
    // Predicated region
    $region30: #{tpu_custom_call.1} parent=1 // pred_check
      _
    $region31: #{tpu_custom_call.1} parent=1 // pred_check_branch
      %61 = sbr.rel (0) target = $region33
    $region32: #{tpu_custom_call.1} parent=1 // pred_region
      %63 = dma.done [#allocation4], 64
    $region33: #{tpu_custom_call.1} parent=1 // pred_fallthru
      _
    // Predicated region
    $region34: #{tpu_custom_call.1} parent=1 // pred_check
      _
    $region35: #{tpu_custom_call.1} parent=1 // pred_check_branch
      %65 = sbr.rel (0) target = $region37
    $region36: #{tpu_custom_call.1} parent=1 // pred_region
      %67 = dma.done [#allocation6], 2048
    $region37: #{tpu_custom_call.1} parent=1 // pred_fallthru
      _
    // Predicated region
    $region38: #{tpu_custom_call.1} parent=1 // pred_check
      _
    $region39: #{tpu_custom_call.1} parent=1 // pred_check_branch
      %69 = sbr.rel (0) target = $region41
    $region40: #{tpu_custom_call.1} parent=1 // pred_region
      %71 = dma.done [#allocation6], 4096
    $region41: #{tpu_custom_call.1} parent=1 // pred_fallthru
      _
    %v72 = vld [vmem:[#allocation3] sm:$0xf]
    %v73 = vld [vmem:[#allocation5] sm:$0xff]
    %v74 = vld [vmem:[#allocation5 + $0x8] sm:$0xff]
    %v75 = vld [vmem:[#allocation5 + $0x10] sm:$0xff]
    %v76 = vld [vmem:[#allocation5 + $0x18] sm:$0xff]
    %v77 = vld [vmem:[#allocation5 + $0x20] sm:$0xff]
    %v78 = vld [vmem:[#allocation5 + $0x28] sm:$0xff]
    %v79 = vld [vmem:[#allocation5 + $0x30] sm:$0xff]
    %v80 = vld [vmem:[#allocation5 + $0x38] sm:$0xff]
    %v81 = vld [vmem:[#allocation5 + $0x40] sm:$0xff]
    %v82 = vld [vmem:[#allocation5 + $0x48] sm:$0xff]
    %v83 = vld [vmem:[#allocation5 + $0x50] sm:$0xff]
    %v84 = vld [vmem:[#allocation5 + $0x58] sm:$0xff]
    %v85 = vld [vmem:[#allocation5 + $0x60] sm:$0xff]
    %v86 = vld [vmem:[#allocation5 + $0x68] sm:$0xff]
    %v87 = vld [vmem:[#allocation5 + $0x70] sm:$0xff]
    %v88 = vld [vmem:[#allocation5 + $0x78] sm:$0xff]
    %v89 = vld [vmem:[%s2] sm:$0x3]
    %v91 = vperm.slane %v89, 0
    %v92 = vperm.slane %v89, 1
    %v111 = vunpack.c.l.b16 %v73
    %v112 = vunpack.c.h.b16 %v73
    %v113 = vunpack.c.l.b16 %v74
    %v114 = vunpack.c.h.b16 %v74
    %v115 = vunpack.c.l.b16 %v75
    %v116 = vunpack.c.h.b16 %v75
    %v117 = vunpack.c.l.b16 %v76
    %v118 = vunpack.c.h.b16 %v76
    %v119 = vunpack.c.l.b16 %v77
    %v120 = vunpack.c.h.b16 %v77
    %v121 = vunpack.c.l.b16 %v78
    %v122 = vunpack.c.h.b16 %v78
    %v123 = vunpack.c.l.b16 %v79
    %v124 = vunpack.c.h.b16 %v79
    %v125 = vunpack.c.l.b16 %v80
    %v126 = vunpack.c.h.b16 %v80
    %v127 = vunpack.c.l.b16 %v81
    %v128 = vunpack.c.h.b16 %v81
    %v129 = vunpack.c.l.b16 %v82
    %v130 = vunpack.c.h.b16 %v82
    %v131 = vunpack.c.l.b16 %v83
    %v132 = vunpack.c.h.b16 %v83
    %v133 = vunpack.c.l.b16 %v84
    %v134 = vunpack.c.h.b16 %v84
    %v135 = vunpack.c.l.b16 %v85
    %v136 = vunpack.c.h.b16 %v85
    %v137 = vunpack.c.l.b16 %v86
    %v138 = vunpack.c.h.b16 %v86
    %v139 = vunpack.c.l.b16 %v87
    %v140 = vunpack.c.h.b16 %v87
    %v141 = vunpack.c.l.b16 %v88
    %v142 = vunpack.c.h.b16 %v88
    %v143 = vpack.c.b16 %v113, %v111
    %v144 = vpack.c.b16 %v114, %v112
    %v145 = vpack.c.b16 %v117, %v115
    %v146 = vpack.c.b16 %v118, %v116
    %v147 = vpack.c.b16 %v121, %v119
    %v148 = vpack.c.b16 %v122, %v120
    %v149 = vpack.c.b16 %v125, %v123
    %v150 = vpack.c.b16 %v126, %v124
    %v151 = vpack.c.b16 %v129, %v127
    %v152 = vpack.c.b16 %v130, %v128
    %v153 = vpack.c.b16 %v133, %v131
    %v154 = vpack.c.b16 %v134, %v132
    %v155 = vpack.c.b16 %v137, %v135
    %v156 = vpack.c.b16 %v138, %v136
    %v157 = vpack.c.b16 %v141, %v139
    %v158 = vpack.c.b16 %v142, %v140
    %175 = vmatpush.bf16.msra.mxu0 %v157
    %176 = vmatpush.bf16.msra.mxu0 %v155
    %177 = vmatpush.bf16.msra.mxu0 %v153
    %178 = vmatpush.bf16.msra.mxu0 %v151
    %179 = vmatpush.bf16.msra.mxu0 %v149
    %180 = vmatpush.bf16.msra.mxu0 %v147
    %181 = vmatpush.bf16.msra.mxu0 %v145
    %182 = vmatpush.bf16.msra.mxu0 %v143
    %183 = vmatmul.bf16.gmra.mxu0 %v72
    %v184 = vpop.f32.mrf.mxu0
    %v185 = vadd.f32 %v91, %v184
    %v186 = vpop.f32.mrf.mxu0
    %187 = vdwg.mxu0
    %188 = vmatpush.bf16.msra.mxu0 %v158
    %189 = vmatpush.bf16.msra.mxu0 %v156
    %190 = vmatpush.bf16.msra.mxu0 %v154
    %191 = vmatpush.bf16.msra.mxu0 %v152
    %192 = vmatpush.bf16.msra.mxu0 %v150
    %193 = vmatpush.bf16.msra.mxu0 %v148
    %194 = vmatpush.bf16.msra.mxu0 %v146
    %195 = vmatpush.bf16.msra.mxu0 %v144
    %196 = vmatmul.bf16.gmra.mxu0 %v72
    %v197 = vpop.f32.mrf.mxu0
    %v198 = vadd.f32 %v92, %v197
    %v199 = vpop.f32.mrf.mxu0
    %200 = vdwg.mxu0
    %v201 = vmax.f32 %v185, 0.0
    %v202 = vmax.f32 %v198, 0.0
    %v203 = vpack.c.bf16 %v201, %v201
    %v204 = vpack.c.bf16 %v202, %v202
    %v205 = vld [vmem:[#allocation7] sm:$0xff]
    %v206 = vld [vmem:[#allocation7 + $0x8] sm:$0xff]
    %v207 = vld [vmem:[#allocation7 + $0x10] sm:$0xff]
    %v208 = vld [vmem:[#allocation7 + $0x18] sm:$0xff]
    %v209 = vld [vmem:[#allocation7 + $0x20] sm:$0xff]
    %v210 = vld [vmem:[#allocation7 + $0x28] sm:$0xff]
    %v211 = vld [vmem:[#allocation7 + $0x30] sm:$0xff]
    %v212 = vld [vmem:[#allocation7 + $0x38] sm:$0xff]
    %v213 = vld [vmem:[#allocation7 + $0x40] sm:$0xff]
    %v214 = vld [vmem:[#allocation7 + $0x48] sm:$0xff]
    %v215 = vld [vmem:[#allocation7 + $0x50] sm:$0xff]
    %v216 = vld [vmem:[#allocation7 + $0x58] sm:$0xff]
    %v217 = vld [vmem:[#allocation7 + $0x60] sm:$0xff]
    %v218 = vld [vmem:[#allocation7 + $0x68] sm:$0xff]
    %v219 = vld [vmem:[#allocation7 + $0x70] sm:$0xff]
    %v220 = vld [vmem:[#allocation7 + $0x78] sm:$0xff]
    %v221 = vld [vmem:[#allocation7 + $0x80] sm:$0xff]
    %v222 = vld [vmem:[#allocation7 + $0x88] sm:$0xff]
    %v223 = vld [vmem:[#allocation7 + $0x90] sm:$0xff]
    %v224 = vld [vmem:[#allocation7 + $0x98] sm:$0xff]
    %v225 = vld [vmem:[#allocation7 + $0xa0] sm:$0xff]
    %v226 = vld [vmem:[#allocation7 + $0xa8] sm:$0xff]
    %v227 = vld [vmem:[#allocation7 + $0xb0] sm:$0xff]
    %v228 = vld [vmem:[#allocation7 + $0xb8] sm:$0xff]
    %v229 = vld [vmem:[#allocation7 + $0xc0] sm:$0xff]
    %v230 = vld [vmem:[#allocation7 + $0xc8] sm:$0xff]
    %v231 = vld [vmem:[#allocation7 + $0xd0] sm:$0xff]
    %v232 = vld [vmem:[#allocation7 + $0xd8] sm:$0xff]
    %v233 = vld [vmem:[#allocation7 + $0xe0] sm:$0xff]
    %v234 = vld [vmem:[#allocation7 + $0xe8] sm:$0xff]
    %v235 = vld [vmem:[#allocation7 + $0xf0] sm:$0xff]
    %v236 = vld [vmem:[#allocation7 + $0xf8] sm:$0xff]
    %v237 = vld [vmem:[%s4] sm:$0x3]
    %v239 = vperm.slane %v237, 0
    %v240 = vperm.slane %v237, 1
    %v275 = vunpack.c.l.b16 %v205
    %v276 = vunpack.c.h.b16 %v205
    %v277 = vunpack.c.l.b16 %v206
    %v278 = vunpack.c.h.b16 %v206
    %v279 = vunpack.c.l.b16 %v207
    %v280 = vunpack.c.h.b16 %v207
    %v281 = vunpack.c.l.b16 %v208
    %v282 = vunpack.c.h.b16 %v208
    %v283 = vunpack.c.l.b16 %v209
    %v284 = vunpack.c.h.b16 %v209
    %v285 = vunpack.c.l.b16 %v210
    %v286 = vunpack.c.h.b16 %v210
    %v287 = vunpack.c.l.b16 %v211
    %v288 = vunpack.c.h.b16 %v211
    %v289 = vunpack.c.l.b16 %v212
    %v290 = vunpack.c.h.b16 %v212
    %v291 = vunpack.c.l.b16 %v213
    %v292 = vunpack.c.h.b16 %v213
    %v293 = vunpack.c.l.b16 %v214
    %v294 = vunpack.c.h.b16 %v214
    %v295 = vunpack.c.l.b16 %v215
    %v296 = vunpack.c.h.b16 %v215
    %v297 = vunpack.c.l.b16 %v216
    %v298 = vunpack.c.h.b16 %v216
    %v299 = vunpack.c.l.b16 %v217
    %v300 = vunpack.c.h.b16 %v217
    %v301 = vunpack.c.l.b16 %v218
    %v302 = vunpack.c.h.b16 %v218
    %v303 = vunpack.c.l.b16 %v219
    %v304 = vunpack.c.h.b16 %v219
    %v305 = vunpack.c.l.b16 %v220
    %v306 = vunpack.c.h.b16 %v220
    %v307 = vunpack.c.l.b16 %v221
    %v308 = vunpack.c.h.b16 %v221
    %v309 = vunpack.c.l.b16 %v222
    %v310 = vunpack.c.h.b16 %v222
    %v311 = vunpack.c.l.b16 %v223
    %v312 = vunpack.c.h.b16 %v223
    %v313 = vunpack.c.l.b16 %v224
    %v314 = vunpack.c.h.b16 %v224
    %v315 = vunpack.c.l.b16 %v225
    %v316 = vunpack.c.h.b16 %v225
    %v317 = vunpack.c.l.b16 %v226
    %v318 = vunpack.c.h.b16 %v226
    %v319 = vunpack.c.l.b16 %v227
    %v320 = vunpack.c.h.b16 %v227
    %v321 = vunpack.c.l.b16 %v228
    %v322 = vunpack.c.h.b16 %v228
    %v323 = vunpack.c.l.b16 %v229
    %v324 = vunpack.c.h.b16 %v229
    %v325 = vunpack.c.l.b16 %v230
    %v326 = vunpack.c.h.b16 %v230
    %v327 = vunpack.c.l.b16 %v231
    %v328 = vunpack.c.h.b16 %v231
    %v329 = vunpack.c.l.b16 %v232
    %v330 = vunpack.c.h.b16 %v232
    %v331 = vunpack.c.l.b16 %v233
    %v332 = vunpack.c.h.b16 %v233
    %v333 = vunpack.c.l.b16 %v234
    %v334 = vunpack.c.h.b16 %v234
    %v335 = vunpack.c.l.b16 %v235
    %v336 = vunpack.c.h.b16 %v235
    %v337 = vunpack.c.l.b16 %v236
    %v338 = vunpack.c.h.b16 %v236
    %v339 = vpack.c.b16 %v277, %v275
    %v340 = vpack.c.b16 %v278, %v276
    %v341 = vpack.c.b16 %v281, %v279
    %v342 = vpack.c.b16 %v282, %v280
    %v343 = vpack.c.b16 %v285, %v283
    %v344 = vpack.c.b16 %v286, %v284
    %v345 = vpack.c.b16 %v289, %v287
    %v346 = vpack.c.b16 %v290, %v288
    %v347 = vpack.c.b16 %v293, %v291
    %v348 = vpack.c.b16 %v294, %v292
    %v349 = vpack.c.b16 %v297, %v295
    %v350 = vpack.c.b16 %v298, %v296
    %v351 = vpack.c.b16 %v301, %v299
    %v352 = vpack.c.b16 %v302, %v300
    %v353 = vpack.c.b16 %v305, %v303
    %v354 = vpack.c.b16 %v306, %v304
    %v355 = vpack.c.b16 %v309, %v307
    %v356 = vpack.c.b16 %v310, %v308
    %v357 = vpack.c.b16 %v313, %v311
    %v358 = vpack.c.b16 %v314, %v312
    %v359 = vpack.c.b16 %v317, %v315
    %v360 = vpack.c.b16 %v318, %v316
    %v361 = vpack.c.b16 %v321, %v319
    %v362 = vpack.c.b16 %v322, %v320
    %v363 = vpack.c.b16 %v325, %v323
    %v364 = vpack.c.b16 %v326, %v324
    %v365 = vpack.c.b16 %v329, %v327
    %v366 = vpack.c.b16 %v330, %v328
    %v367 = vpack.c.b16 %v333, %v331
    %v368 = vpack.c.b16 %v334, %v332
    %v369 = vpack.c.b16 %v337, %v335
    %v370 = vpack.c.b16 %v338, %v336
    %403 = vmatpush.bf16.msra.mxu0 %v353
    %404 = vmatpush.bf16.msra.mxu0 %v351
    %405 = vmatpush.bf16.msra.mxu0 %v349
    %406 = vmatpush.bf16.msra.mxu0 %v347
    %407 = vmatpush.bf16.msra.mxu0 %v345
    %408 = vmatpush.bf16.msra.mxu0 %v343
    %409 = vmatpush.bf16.msra.mxu0 %v341
    %410 = vmatpush.bf16.msra.mxu0 %v339
    %411 = vmatmul.bf16.gmra.mxu0 %v203
    %v412 = vpop.f32.mrf.mxu0
    %v413 = vadd.f32 %v239, %v412
    %v414 = vpop.f32.mrf.mxu0
    %415 = vdwg.mxu0
    %416 = vmatpush.bf16.msra.mxu0 %v369
    %417 = vmatpush.bf16.msra.mxu0 %v367
    %418 = vmatpush.bf16.msra.mxu0 %v365
    %419 = vmatpush.bf16.msra.mxu0 %v363
    %420 = vmatpush.bf16.msra.mxu0 %v361
    %421 = vmatpush.bf16.msra.mxu0 %v359
    %422 = vmatpush.bf16.msra.mxu0 %v357
    %423 = vmatpush.bf16.msra.mxu0 %v355
    %424 = vmatmul.bf16.gmra.mxu0 %v204
    %v425 = vpop.f32.mrf.mxu0
    %v426 = vadd.f32 %v413, %v425
    %v427 = vpop.f32.mrf.mxu0
    %428 = vdwg.mxu0
    %429 = vmatpush.bf16.msra.mxu0 %v354
    %430 = vmatpush.bf16.msra.mxu0 %v352
    %431 = vmatpush.bf16.msra.mxu0 %v350
    %432 = vmatpush.bf16.msra.mxu0 %v348
    %433 = vmatpush.bf16.msra.mxu0 %v346
    %434 = vmatpush.bf16.msra.mxu0 %v344
    %435 = vmatpush.bf16.msra.mxu0 %v342
    %436 = vmatpush.bf16.msra.mxu0 %v340
    %437 = vmatmul.bf16.gmra.mxu0 %v203
    %v438 = vpop.f32.mrf.mxu0
    %v439 = vadd.f32 %v240, %v438
    %v440 = vpop.f32.mrf.mxu0
    %441 = vdwg.mxu0
    %442 = vmatpush.bf16.msra.mxu0 %v370
    %443 = vmatpush.bf16.msra.mxu0 %v368
    %444 = vmatpush.bf16.msra.mxu0 %v366
    %445 = vmatpush.bf16.msra.mxu0 %v364
    %446 = vmatpush.bf16.msra.mxu0 %v362
    %447 = vmatpush.bf16.msra.mxu0 %v360
    %448 = vmatpush.bf16.msra.mxu0 %v358
    %449 = vmatpush.bf16.msra.mxu0 %v356
    %450 = vmatmul.bf16.gmra.mxu0 %v204
    %v451 = vpop.f32.mrf.mxu0
    %v452 = vadd.f32 %v439, %v451
    %v453 = vpop.f32.mrf.mxu0
    %454 = vdwg.mxu0
    %v455 = vmax.f32 %v426, 0.0
    %v456 = vmax.f32 %v452, 0.0
    %v457 = vld [vmem:[%s5] sm:$0x3]
    %v459 = vperm.slane %v457, 0
    %v460 = vperm.slane %v457, 1
    %v463 = vmul.f32 %v455, %v459
    %v464 = vmul.f32 %v456, %v460
    %v465 = vadd.f32 %v463, %v464
    %466 = vadd.xlane.f32.xlu0 %v465
    %v467 = vpop.xlane.xlu0 %466
    %s468 = sld [smem:[#allocation2]]
    %v469 = vstv %s468
    %v470 = vadd.f32 %v467, %v469
    %vm471 = vcmask 7168
    %472 = vst.msk [vmem:[%s7] sm:$0xff] %vm471, %v470
    // Predicated region
    $region42: #{tpu_custom_call.1} parent=1 // pred_check
      _
    $region43: #{tpu_custom_call.1} parent=1 // pred_check_branch
      %474 = sbr.rel (0) target = $region45
    $region44: #{tpu_custom_call.1} parent=1 // pred_region
      _
    $region45: #{tpu_custom_call.1} parent=1 // pred_fallthru
      _
    // Predicated region
    $region46: #{tpu_custom_call.1} parent=1 // pred_check
      _
    $region47: #{tpu_custom_call.1} parent=1 // pred_check_branch
      %476 = sbr.rel (0) target = $region49
    $region48: #{tpu_custom_call.1} parent=1 // pred_region
      _
    $region49: #{tpu_custom_call.1} parent=1 // pred_fallthru
      _
    %477 = vsyncpa [#allocation4], 1
    %478 = vsyncpa [#allocation6], 1

</llo_original>
